<compile_context>
chip_gen: v7x
topology: tpu7x:2x2x1
jax: 0.10.0
libtpu: 0.0.40
codegen_flags: <defaults>
</compile_context>

<pallas_src>
import math

import jax
import jax.numpy as jnp
from jax.experimental import pallas as pl
from jax.experimental.pallas import tpu as pltpu

_LANE = 128


def _scaling_kernel(x_ref, scale_ref, o_ref):
    # x_ref: (tile_b, tile_f); scale_ref: (1, tile_f) broadcasts over sublanes.
    o_ref[...] = (x_ref[...] * scale_ref[...]).astype(o_ref.dtype)


def _round_up(x: int, m: int) -> int:
    return ((x + m - 1) // m) * m


def _cdiv(a: int, b: int) -> int:
    return (a + b - 1) // b


def _sublane_multiple(dtype) -> int:
    # 8 rows per vreg for 4-byte dtypes, 16 for 2-byte, 32 for 1-byte.
    itemsize = jnp.dtype(dtype).itemsize
    return max(8, 32 // itemsize)


def _hw_budgets():
    """Return (vmem_capacity_bytes, target_x_block_bytes), generation-aware."""
    cap = None
    try:
        cap = getattr(pltpu.get_tpu_info(), "vmem_capacity_bytes", None)
    except Exception:
        cap = None
    if not cap:
        cap = 64 << 20                      # conservative: v7x-sized VMEM / TC
    target = (8 << 20) if cap >= (96 << 20) else (4 << 20)
    return int(cap), int(target)


def scaling_layer(x: jnp.ndarray, scale: jnp.ndarray) -> jnp.ndarray:
    """Apply per-feature scaling: out = x * scale[None, :].

    x:     (B, F)
    scale: (F,)   (cast to x.dtype for a native-dtype multiply)
    """
    B, F = x.shape
    assert scale.shape == (F,)
    out_dtype = x.dtype
    scale = scale.astype(out_dtype)

    # ---- wrapper-side layout: guarantee a lane-dense (128-multiple) last dim.
    fold, pad_b, pad_f = 1, 0, 0
    if F < _LANE:
        fold = math.lcm(F, _LANE) // F
        b_pad_to = _round_up(B, fold)
        pad_b = b_pad_to - B
        if pad_b:
            x = jnp.pad(x, ((0, pad_b), (0, 0)))
        x2 = x.reshape(b_pad_to // fold, fold * F)
        s2 = jnp.tile(scale, fold).reshape(1, fold * F)
    elif F % _LANE != 0:
        pad_f = _round_up(F, _LANE) - F
        x2 = jnp.pad(x, ((0, 0), (0, pad_f)))
        s2 = jnp.pad(scale, (0, pad_f)).reshape(1, F + pad_f)
    else:
        x2 = x
        s2 = scale.reshape(1, F)

    B2, F2 = x2.shape
    itemsize = jnp.dtype(out_dtype).itemsize
    sub = _sublane_multiple(out_dtype)
    vmem_cap, target_block = _hw_budgets()

    # ---- tiling: prefer full-feature stripes (contiguous HBM, 1-D grid).
    row_bytes = F2 * itemsize
    if sub * row_bytes <= target_block:
        tile_f = F2
        tile_b = max(sub, (target_block // row_bytes) // sub * sub)
        if tile_b >= B2:
            if B2 >= 2 * sub:
                # Keep >= 2 parallel blocks so v7x's two TensorCores both stream.
                tile_b = _round_up((B2 + 1) // 2, sub)
            else:
                tile_b = B2          # full-extent block (always legal)
    else:
        # Extremely wide rows: tile the feature axis too (rare path).
        tile_b = min(sub, B2)
        tile_f = (target_block // (tile_b * itemsize)) // _LANE * _LANE
        tile_f = min(max(tile_f, _LANE), F2)

    num_b = _cdiv(B2, tile_b)
    num_f = _cdiv(F2, tile_f)

    if num_f == 1:
        grid = (num_b,)
        x_spec = pl.BlockSpec((tile_b, tile_f), lambda i: (i, 0))
        s_spec = pl.BlockSpec((1, tile_f), lambda i: (0, 0))
        o_spec = pl.BlockSpec((tile_b, tile_f), lambda i: (i, 0))
        dim_sem = ("parallel",)
    else:
        # Batch innermost -> scale block index constant across consecutive steps.
        grid = (num_f, num_b)
        x_spec = pl.BlockSpec((tile_b, tile_f), lambda fi, bi: (bi, fi))
        s_spec = pl.BlockSpec((1, tile_f), lambda fi, bi: (0, fi))
        o_spec = pl.BlockSpec((tile_b, tile_f), lambda fi, bi: (bi, fi))
        dim_sem = ("parallel", "parallel")

    # VMEM limit derived from the actual double-buffered live set (+slack),
    # capped at 3/4 of physical capacity (tight on v7x, roomy on v5e/v6e).
    x_block_bytes = tile_b * tile_f * itemsize
    s_block_bytes = tile_f * itemsize
    vmem_need = 4 * x_block_bytes + 2 * s_block_bytes + (2 << 20)
    vmem_limit = min(max(vmem_need, 16 << 20), (vmem_cap * 3) // 4)

    out = pl.pallas_call(
        _scaling_kernel,
        out_shape=jax.ShapeDtypeStruct((B2, F2), out_dtype),
        grid_spec=pl.GridSpec(
            grid=grid,
            in_specs=[x_spec, s_spec],
            out_specs=o_spec,
        ),
        compiler_params=pltpu.CompilerParams(
            dimension_semantics=dim_sem,
            vmem_limit_bytes=int(vmem_limit),
        ),
    )(x2, s2)

    # ---- undo wrapper-side layout changes.
    if fold > 1:
        out = out.reshape(B + pad_b, F)
        if pad_b:
            out = out[:B]
    elif pad_f:
        out = out[:, :F]
    return out


if __name__ == "__main__":
    key = jax.random.PRNGKey(0)
    k1, k2, k3, k4, k5 = jax.random.split(key, 5)

    # 1) Narrow-F path (F < 128): lane folding, B a multiple of the fold factor.
    batch, n_features = 8, 32
    x = jax.random.normal(k1, (batch, n_features), dtype=jnp.float32)
    scale = jnp.ones((n_features,), dtype=jnp.float32)   # nn.Parameter(torch.ones(F))
    out = jax.block_until_ready(scaling_layer(x, scale))
    assert out.shape == (batch, n_features) and out.dtype == x.dtype
    assert jnp.allclose(out, x * scale[None, :], atol=1e-6), "mismatch (narrow F)"

    # 2) Lane-dense wide-F path with non-trivial scale (exercises the 2-block split).
    x_b = jax.random.normal(k2, (64, 256), dtype=jnp.float32)
    s_b = jax.random.normal(k3, (256,), dtype=jnp.float32)
    out_b = jax.block_until_ready(scaling_layer(x_b, s_b))
    assert jnp.allclose(out_b, x_b * s_b[None, :], atol=1e-6), "mismatch (wide F)"

    # 3) Unaligned F (>=128, not a multiple of 128): wrapper pads F to 256.
    x_c = jax.random.normal(k4, (10, 200), dtype=jnp.float32)
    s_c = jax.random.normal(k5, (200,), dtype=jnp.float32)
    out_c = jax.block_until_ready(scaling_layer(x_c, s_c))
    assert out_c.shape == (10, 200)
    assert jnp.allclose(out_c, x_c * s_c[None, :], atol=1e-6), "mismatch (padded F)"

    # 4) Narrow F with B not a multiple of the fold factor (wrapper pads B).
    x_d = jax.random.normal(jax.random.PRNGKey(1), (10, 48), dtype=jnp.float32)
    s_d = jax.random.normal(jax.random.PRNGKey(2), (48,), dtype=jnp.float32)
    out_d = jax.block_until_ready(scaling_layer(x_d, s_d))
    assert out_d.shape == (10, 48)
    assert jnp.allclose(out_d, x_d * s_d[None, :], atol=1e-6), "mismatch (padded B fold)"

    print("KERNEL_OK")
</pallas_src>

<mosaic_0001>
module attributes {stable_mosaic.version = 11 : i64} {
  func.func @_scaling_kernel(%arg0: i32, %arg1: memref<2x128xf32, #tpu.memory_space<vmem>>, %arg2: memref<1x128xf32, #tpu.memory_space<vmem>>, %arg3: memref<2x128xf32, #tpu.memory_space<vmem>>) attributes {dimension_semantics = [#tpu.dimension_semantics<parallel>], iteration_bounds = array<i64: 1>, scalar_prefetch = 0 : i64, scratch_operands = 0 : i64, tpu.core_type = #tpu.core_type<tc>, window_params = [{transform_indices = @transform_0, window_bounds = array<i64: 2, 128>}, {pipeline_mode = #tpu.pipeline_mode<synchronous>, transform_indices = @transform_1, window_bounds = array<i64: 1, 128>}, {transform_indices = @transform_2, window_bounds = array<i64: 2, 128>}]} {
    %c0 = arith.constant 0 : index
    %c0_0 = arith.constant 0 : index
    %0 = vector.load %arg1[%c0, %c0_0] : memref<2x128xf32, #tpu.memory_space<vmem>>, vector<2x128xf32>
    %c0_1 = arith.constant 0 : index
    %c0_2 = arith.constant 0 : index
    %1 = vector.load %arg2[%c0_1, %c0_2] : memref<1x128xf32, #tpu.memory_space<vmem>>, vector<1x128xf32>
    %2 = vector.broadcast %1 : vector<1x128xf32> to vector<2x128xf32>
    %3 = arith.mulf %0, %2 : vector<2x128xf32>
    %c0_3 = arith.constant 0 : index
    %c0_4 = arith.constant 0 : index
    %4 = vector.load %arg3[%c0_3, %c0_4] : memref<2x128xf32, #tpu.memory_space<vmem>>, vector<2x128xf32>
    tpu.vector_store %arg3[%c0_3, %c0_4], %3 {strides = array<i32>} : memref<2x128xf32, #tpu.memory_space<vmem>>, vector<2x128xf32>,
    return
  }
  func.func @transform_0(%arg0: i32) -> (i32, i32) {
    %c0_i32 = arith.constant 0 : i32
    %c0_i32_0 = arith.constant 0 : i32
    return %arg0, %c0_i32 : i32, i32
  }
  func.func @transform_1(%arg0: i32) -> (i32, i32) {
    %c0_i32 = arith.constant 0 : i32
    %c0_i32_0 = arith.constant 0 : i32
    %c0_i32_1 = arith.constant 0 : i32
    return %c0_i32, %c0_i32_0 : i32, i32
  }
  func.func @transform_2(%arg0: i32) -> (i32, i32) {
    %c0_i32 = arith.constant 0 : i32
    %c0_i32_0 = arith.constant 0 : i32
    return %arg0, %c0_i32 : i32, i32
  }
}

</mosaic_0001>

<llo_original>
// kernel: tpu_custom_call.1
$region0: #{tpu_custom_call.1}
  #allocation0 [shape = 'u32[]', space=smem, size = 0x4, offset = 0x4, fixed_abs, tag = 'smem constant byte address 0x4 - core index']
  #allocation1 [shape = 'u32[144,128]{1,0:T(1,128)}', space=vmem, size = 0x12000, scoped, tag = 'internal scratch']
  %s0 = inlined_call_operand.hbm [shape: f32[2,128], index: 0, kind: input, shape index: {}]
  %s1 = inlined_call_operand.vmem [shape: f32[1,128], index: 1, kind: input, shape index: {}]
  %s2 = inlined_call_operand.hbm [shape: f32[2,128], index: 2, kind: output, shape index: {}]
  %s3 = sld [smem:[#allocation0]]
  $region22: #{tpu_custom_call.1} parent=0
    _
  %s5 = ssub.s32 1, %s3
  %s6 = scalar_select 0, %s5, %s3
  $region1: #{tpu_custom_call.1} parent=0
    #allocation2 [shape = 'u8[1024]{0}', space=vmem, size = 0x400, scoped, tag = 'input window, operand 0, single buffered']
    #allocation3 [shape = 's32[1]{0}', space=sflag, size = 0x4, scoped, tag = 'scoped memory for tpu_custom_call.1']
    #allocation4 [shape = 's32[1]{0}', space=sflag, size = 0x4, scoped, tag = 'scoped memory for tpu_custom_call.1']
    #allocation5 [shape = 'u8[1024]{0}', space=vmem, size = 0x400, scoped, tag = 'output window, operand 0, single buffered']
    %7 = vsyncpa [#allocation3], 0
    %8 = vsyncpa [#allocation4], 0
    // Predicated region
    $region2: #{tpu_custom_call.1} parent=1 // pred_check
      _
    $region3: #{tpu_custom_call.1} parent=1 // pred_check_branch
      %10 = sbr.rel (0) target = $region5
    $region4: #{tpu_custom_call.1} parent=1 // pred_region
      %s12 = ssub.s32 32, 32
      %13 = vsyncadd [#allocation3], %s12
      %s15 = sshll.u32 [#allocation2], 4
      %s16 = int_to_ptr.vmem [resolvable:$true] %s15
      %18 = dma.hbm_to_vmem [thread:$0]  %s0, 32, %s16, [#allocation3]
    $region5: #{tpu_custom_call.1} parent=1 // pred_fallthru
      _
    // Predicated region
    $region6: #{tpu_custom_call.1} parent=1 // pred_check
      _
    $region7: #{tpu_custom_call.1} parent=1 // pred_check_branch
      %20 = sbr.rel (0) target = $region9
    $region8: #{tpu_custom_call.1} parent=1 // pred_region
      _
    $region9: #{tpu_custom_call.1} parent=1 // pred_fallthru
      _
    // Predicated region
    $region10: #{tpu_custom_call.1} parent=1 // pred_check
      _
    $region11: #{tpu_custom_call.1} parent=1 // pred_check_branch
      %22 = sbr.rel (0) target = $region13
    $region12: #{tpu_custom_call.1} parent=1 // pred_region
      %23 = dma.done [#allocation3], 32
    $region13: #{tpu_custom_call.1} parent=1 // pred_fallthru
      _
    %v24 = vld [vmem:[#allocation2] sm:$0x3]
    %v25 = vld [vmem:[%s1] sm:$0x1]
    %v27 = vlaneseq
    %v28 = vshrl.u32 %v27, 7
    %v29 = vsub.s32 0, %v28
    %v30 = vrot.slane %v25, %v29
    %v32 = vmul.f32 %v24, %v30
    %33 = vst [vmem:[#allocation5] sm:$0x3] %v32
    // Predicated region
    $region14: #{tpu_custom_call.1} parent=1 // pred_check
      _
    $region15: #{tpu_custom_call.1} parent=1 // pred_check_branch
      %35 = sbr.rel (0) target = $region17
    $region16: #{tpu_custom_call.1} parent=1 // pred_region
      %s37 = ssub.s32 32, 32
      %38 = vsyncadd [#allocation4], %s37
      %s40 = sshll.u32 [#allocation5], 4
      %s41 = int_to_ptr.vmem [resolvable:$true] %s40
      %43 = dma.vmem_to_hbm [thread:$0]  %s41, 32, %s2, [#allocation4]
    $region17: #{tpu_custom_call.1} parent=1 // pred_fallthru
      _
    // Predicated region
    $region18: #{tpu_custom_call.1} parent=1 // pred_check
      _
    $region19: #{tpu_custom_call.1} parent=1 // pred_check_branch
      %45 = sbr.rel (0) target = $region21
    $region20: #{tpu_custom_call.1} parent=1 // pred_region
      %46 = dma.done [#allocation4], 32
    $region21: #{tpu_custom_call.1} parent=1 // pred_fallthru
      _
    %47 = vsyncpa [#allocation3], 1
    %48 = vsyncpa [#allocation4], 1

</llo_original>
